<compile_context>
chip_gen: v7x
topology: tpu7x:2x2x1
jax: 0.10.0
libtpu: 0.0.40
codegen_flags: <defaults>
</compile_context>

<pallas_src>
import math

import jax
import jax.numpy as jnp
from jax.experimental import pallas as pl
from jax.experimental.pallas import tpu as pltpu


def _round_up(x, m):
    return (x + m - 1) // m * m


def _create_dct_matrix(N, dtype=jnp.float32):
    n = jnp.arange(N, dtype=dtype)[None, :]
    k = jnp.arange(N, dtype=dtype)[:, None]
    dct = jnp.cos(math.pi * (2.0 * n + 1.0) * k / (2.0 * N))
    dct = dct.at[0].multiply(1.0 / math.sqrt(2.0))
    dct = dct * math.sqrt(2.0 / N)
    return dct


def _num_tensorcores():
    try:
        if "v7" in jax.devices()[0].device_kind.lower():
            return 2
    except Exception:
        pass
    return 1


def _vmem_capacity_bytes():
    try:
        return int(pltpu.get_tpu_info().vmem_capacity_bytes)
    except Exception:
        pass
    try:
        dk = jax.devices()[0].device_kind.lower()
    except Exception:
        dk = ""
    if any(v in dk for v in ("v4", "v5", "v6")):
        return 128 << 20
    return 64 << 20  # conservative (v7x per-TC) when unknown


def fold_dct_adapter_weights(w_down, w_up, *, compute_dtype=jnp.bfloat16):
    """One-time (init-time) fold of the DCT into the adapter weights.

    w_down: (bottleneck, D), w_up: (D, bottleneck).
    Returns (w1t, w2), bottleneck axis zero-padded to a multiple of 128:
      w1t = C.T @ w_down.T  ->  (D, BP)
      w2  = w_up.T @ C      ->  (BP, D)
    Padding is exact: tanh(0) = 0 and the padded rows of w2 are zero.
    Call this ONCE per parameter set (not per forward call).
    """
    bottleneck, D = w_down.shape
    C = _create_dct_matrix(D, dtype=jnp.float32)
    w1t = C.T @ w_down.astype(jnp.float32).T          # (D, bottleneck)
    w2 = w_up.astype(jnp.float32).T @ C               # (bottleneck, D)
    bp = _round_up(bottleneck, 128)
    w1t = jnp.pad(w1t, ((0, 0), (0, bp - bottleneck))).astype(compute_dtype)
    w2 = jnp.pad(w2, ((0, bp - bottleneck), (0, 0))).astype(compute_dtype)
    return w1t, w2


def _dct_adapter_kernel(x_ref, w1_ref, w2_ref, o_ref):
    # x_ref : (tm, D)   token rows (residual-stream dtype)
    # w1_ref: (D, BP)   folded down-projection (bottleneck zero-padded)
    # w2_ref: (BP, D)   folded up-projection
    # o_ref : (tm, D)   x + adapter delta
    x = x_ref[...]
    xc = x.astype(w1_ref.dtype)
    h = jnp.tanh(jnp.dot(xc, w1_ref[...], preferred_element_type=jnp.float32))
    delta = jnp.dot(h.astype(w2_ref.dtype), w2_ref[...],
                    preferred_element_type=jnp.float32)
    o_ref[...] = (x.astype(jnp.float32) + delta).astype(o_ref.dtype)


def dct_adapter_forward(hidden_states, w1t, w2, *, tm=512,
                        single_buffer_weights=True, donate_x=False):
    """DCTAdapter forward:  out = x + tanh(x @ w1t) @ w2.

    hidden_states: (..., D).  w1t: (D, BP), w2: (BP, D) from
    fold_dct_adapter_weights (precomputed once at init).
    donate_x: set input_output_aliases={0:0} (only safe under jit with a
    donated hidden_states buffer).
    """
    orig_shape = hidden_states.shape
    D = orig_shape[-1]
    if w1t.shape[0] != D or w2.shape[-1] != D or w1t.shape[1] != w2.shape[0]:
        raise ValueError(f"folded weight shapes {w1t.shape}, {w2.shape} do not "
                         f"match hidden dim {D}")
    bp = w1t.shape[1]

    x2d = hidden_states.reshape(-1, D)
    M = x2d.shape[0]

    x_bytes = jnp.dtype(hidden_states.dtype).itemsize
    w_bytes = jnp.dtype(w1t.dtype).itemsize

    # --- row tile: multiple of 16 (bf16 sublane tile), >= 2 steps per core ---
    SUB = 16
    steps_target = 2 * _num_tensorcores()
    tm_eff = min(_round_up(max(tm, SUB), SUB),
                 max(SUB, _round_up(-(-M // steps_target), SUB)))

    w_buf = 1 if single_buffer_weights else 2

    def _vmem_budget(t):
        io = 2 * (t * D * x_bytes) * 2                    # x + out, double-buffered
        wts = w_buf * 2 * (bp * D) * w_bytes              # w1t + w2 resident
        interm = t * D * (w_bytes + 4 + 4)                # x cast, f32 delta, f32 add
        interm += t * bp * (4 + w_bytes)                  # f32 h + its cast
        return io + wts + interm

    vmem_cap = _vmem_capacity_bytes()
    if vmem_cap <= (64 << 20):          # v7x: 64 MiB per TensorCore
        shrink_thresh, limit_cap = 40 << 20, 48 << 20
    else:                               # v5e / v6e: 128 MiB
        shrink_thresh, limit_cap = 96 << 20, 108 << 20

    while tm_eff > SUB and _vmem_budget(tm_eff) > shrink_thresh:
        tm_eff = max(SUB, _round_up(tm_eff // 2, SUB))

    vmem_limit = int(min(limit_cap,
                         max(16 << 20, _vmem_budget(tm_eff) + (8 << 20))))

    # Ragged M: final block is partial; Pallas masks its out-of-bounds row
    # stores and the computation is row-independent, so no pad/slice copies.
    grid = (pl.cdiv(M, tm_eff),)

    def _const_spec(shape, single_buffer):
        idx = lambda i: (0, 0)
        if single_buffer:
            try:
                return pl.BlockSpec(shape, idx, pipeline_mode=pl.Buffered(1))
            except Exception:
                pass
        return pl.BlockSpec(shape, idx)

    def _call(single_buffer):
        return pl.pallas_call(
            _dct_adapter_kernel,
            out_shape=jax.ShapeDtypeStruct((M, D), hidden_states.dtype),
            grid_spec=pltpu.PrefetchScalarGridSpec(
                num_scalar_prefetch=0,
                grid=grid,
                in_specs=[
                    pl.BlockSpec((tm_eff, D), lambda i: (i, 0)),   # x rows
                    _const_spec((D, bp), single_buffer),           # folded down-proj
                    _const_spec((bp, D), single_buffer),           # folded up-proj
                ],
                out_specs=pl.BlockSpec((tm_eff, D), lambda i: (i, 0)),
            ),
            compiler_params=pltpu.CompilerParams(
                dimension_semantics=("parallel",),
                vmem_limit_bytes=vmem_limit,
            ),
            input_output_aliases=({0: 0} if donate_x else {}),
        )(x2d, w1t, w2)

    try:
        out2d = _call(single_buffer_weights)
    except Exception:
        if not single_buffer_weights:
            raise
        out2d = _call(False)   # fall back to default double-buffered weights

    return out2d.reshape(orig_shape)


def _reference(hidden_states, w_down, w_up):
    """Pure-JAX mirror of the PyTorch forward (no DCT fold)."""
    D = hidden_states.shape[-1]
    C = _create_dct_matrix(D, dtype=jnp.float32)
    x = hidden_states.astype(jnp.float32)
    dct = x @ C.T
    z = dct.reshape(-1, D)
    h = jnp.tanh(z @ w_down.astype(jnp.float32).T)
    zp = h @ w_up.astype(jnp.float32).T
    idct = zp.reshape(dct.shape) @ C
    return (x + idct).astype(hidden_states.dtype)


if __name__ == "__main__":
    # Small shapes consistent with the module: batch=2, seq=8, hidden=32.
    B, S, D = 2, 8, 32
    BOTTLENECK = 18

    key = jax.random.PRNGKey(0)
    kx, kd, ku = jax.random.split(key, 3)

    hidden_states = jax.random.normal(kx, (B, S, D), dtype=jnp.float32)
    w_down = jax.random.normal(kd, (BOTTLENECK, D), dtype=jnp.float32) * (1.0 / math.sqrt(D))
    w_up = jax.random.normal(ku, (D, BOTTLENECK), dtype=jnp.float32) * (1.0 / math.sqrt(BOTTLENECK))

    ref = _reference(hidden_states, w_down, w_up)

    # f32-operand path: tight check against the unfolded reference.
    w1_f32, w2_f32 = fold_dct_adapter_weights(w_down, w_up, compute_dtype=jnp.float32)
    out_f32 = jax.block_until_ready(dct_adapter_forward(hidden_states, w1_f32, w2_f32))
    assert out_f32.shape == hidden_states.shape
    err_f32 = float(jnp.max(jnp.abs(out_f32 - ref)))
    assert err_f32 < 5e-4, err_f32

    # Default production path: bf16 MXU operands, f32 accumulation.
    w1_bf, w2_bf = fold_dct_adapter_weights(w_down, w_up)
    out_bf = jax.block_until_ready(dct_adapter_forward(hidden_states, w1_bf, w2_bf))
    assert out_bf.shape == hidden_states.shape
    err_bf = float(jnp.max(jnp.abs(out_bf.astype(jnp.float32) - ref)))
    assert err_bf < 1e-1, err_bf

    # TODO(synk): gumbel_softmax_mask / adapter_gate_logits are dead code in the
    # module's forward() and are intentionally not implemented.
    print("KERNEL_OK")
</pallas_src>

<mosaic_0001>
module attributes {stable_mosaic.version = 11 : i64} {
  func.func @_dct_adapter_kernel(%arg0: i32, %arg1: memref<16x32xf32, #tpu.memory_space<vmem>>, %arg2: memref<32x128xf32, #tpu.memory_space<vmem>>, %arg3: memref<128x32xf32, #tpu.memory_space<vmem>>, %arg4: memref<16x32xf32, #tpu.memory_space<vmem>>) attributes {dimension_semantics = [#tpu.dimension_semantics<parallel>], iteration_bounds = array<i64: 1>, scalar_prefetch = 0 : i64, scratch_operands = 0 : i64, tpu.core_type = #tpu.core_type<tc>, window_params = [{transform_indices = @transform_0, window_bounds = array<i64: 16, 32>}, {pipeline_mode = #tpu.pipeline_mode<synchronous>, transform_indices = @transform_1, window_bounds = array<i64: 32, 128>}, {pipeline_mode = #tpu.pipeline_mode<synchronous>, transform_indices = @transform_2, window_bounds = array<i64: 128, 32>}, {transform_indices = @transform_3, window_bounds = array<i64: 16, 32>}]} {
    %c0 = arith.constant 0 : index
    %c0_0 = arith.constant 0 : index
    %0 = vector.load %arg1[%c0, %c0_0] : memref<16x32xf32, #tpu.memory_space<vmem>>, vector<16x32xf32>
    %c0_1 = arith.constant 0 : index
    %c0_2 = arith.constant 0 : index
    %1 = vector.load %arg2[%c0_1, %c0_2] : memref<32x128xf32, #tpu.memory_space<vmem>>, vector<32x128xf32>
    %cst = arith.constant dense<0.000000e+00> : vector<16x128xf32>
    %2 = tpu.matmul %0, %1, %cst {dimension_numbers = #tpu.dot_dimension_numbers<[1], [0], [0], [1], [0, 0, 1, 1], [], []>} : vector<16x32xf32>, vector<32x128xf32>, vector<16x128xf32> -> vector<16x128xf32>
    %3 = math.tanh %2 : vector<16x128xf32>
    %c0_3 = arith.constant 0 : index
    %c0_4 = arith.constant 0 : index
    %4 = vector.load %arg3[%c0_3, %c0_4] : memref<128x32xf32, #tpu.memory_space<vmem>>, vector<128x32xf32>
    %cst_5 = arith.constant dense<0.000000e+00> : vector<16x32xf32>
    %5 = tpu.matmul %3, %4, %cst_5 {dimension_numbers = #tpu.dot_dimension_numbers<[1], [0], [0], [1], [0, 0, 1, 1], [], []>} : vector<16x128xf32>, vector<128x32xf32>, vector<16x32xf32> -> vector<16x32xf32>
    %6 = arith.addf %0, %5 : vector<16x32xf32>
    %c0_6 = arith.constant 0 : index
    %c0_7 = arith.constant 0 : index
    %7 = vector.load %arg4[%c0_6, %c0_7] : memref<16x32xf32, #tpu.memory_space<vmem>>, vector<16x32xf32>
    tpu.vector_store %arg4[%c0_6, %c0_7], %6 {strides = array<i32>} : memref<16x32xf32, #tpu.memory_space<vmem>>, vector<16x32xf32>,
    return
  }
  func.func @transform_0(%arg0: i32) -> (i32, i32) {
    %c0_i32 = arith.constant 0 : i32
    %c0_i32_0 = arith.constant 0 : i32
    return %arg0, %c0_i32 : i32, i32
  }
  func.func @transform_1(%arg0: i32) -> (i32, i32) {
    %c0_i32 = arith.constant 0 : i32
    %c0_i32_0 = arith.constant 0 : i32
    %c0_i32_1 = arith.constant 0 : i32
    return %c0_i32, %c0_i32_0 : i32, i32
  }
  func.func @transform_2(%arg0: i32) -> (i32, i32) {
    %c0_i32 = arith.constant 0 : i32
    %c0_i32_0 = arith.constant 0 : i32
    %c0_i32_1 = arith.constant 0 : i32
    return %c0_i32, %c0_i32_0 : i32, i32
  }
  func.func @transform_3(%arg0: i32) -> (i32, i32) {
    %c0_i32 = arith.constant 0 : i32
    %c0_i32_0 = arith.constant 0 : i32
    return %arg0, %c0_i32 : i32, i32
  }
}

module attributes {stable_mosaic.version = 11 : i64} {
  func.func @_dct_adapter_kernel(%arg0: i32, %arg1: memref<16x32xf32, #tpu.memory_space<vmem>>, %arg2: memref<32x128xf32, #tpu.memory_space<vmem>>, %arg3: memref<128x32xf32, #tpu.memory_space<vmem>>, %arg4: memref<16x32xf32, #tpu.memory_space<vmem>>) attributes {dimension_semantics = [#tpu.dimension_semantics<parallel>], iteration_bounds = array<i64: 1>, scalar_prefetch = 0 : i64, scratch_operands = 0 : i64, tpu.core_type = #tpu.core_type<tc>, window_params = [{transform_indices = @transform_0, window_bounds = array<i64: 16, 32>}, {pipeline_mode = #tpu.pipeline_mode<synchronous>, transform_indices = @transform_1, window_bounds = array<i64: 32, 128>}, {pipeline_mode = #tpu.pipeline_mode<synchronous>, transform_indices = @transform_2, window_bounds = array<i64: 128, 32>}, {transform_indices = @transform_3, window_bounds = array<i64: 16, 32>}]} {
    %c0 = arith.constant 0 : index
    %c0_0 = arith.constant 0 : index
    %0 = vector.load %arg1[%c0, %c0_0] : memref<16x32xf32, #tpu.memory_space<vmem>>, vector<16x32xf32>
    %c0_1 = arith.constant 0 : index
    %c0_2 = arith.constant 0 : index
    %1 = vector.load %arg2[%c0_1, %c0_2] : memref<32x128xf32, #tpu.memory_space<vmem>>, vector<32x128xf32>
    %cst = arith.constant dense<0.000000e+00> : vector<16x128xf32>
    %2 = tpu.matmul %0, %1, %cst {dimension_numbers = #tpu.dot_dimension_numbers<[1], [0], [0], [1], [0, 0, 1, 1], [], []>} : vector<16x32xf32>, vector<32x128xf32>, vector<16x128xf32> -> vector<16x128xf32>
    %3 = math.tanh %2 : vector<16x128xf32>
    %c0_3 = arith.constant 0 : index
    %c0_4 = arith.constant 0 : index
    %4 = vector.load %arg3[%c0_3, %c0_4] : memref<128x32xf32, #tpu.memory_space<vmem>>, vector<128x32xf32>
    %cst_5 = arith.constant dense<0.000000e+00> : vector<16x32xf32>
    %5 = tpu.matmul %3, %4, %cst_5 {dimension_numbers = #tpu.dot_dimension_numbers<[1], [0], [0], [1], [0, 0, 1, 1], [], []>} : vector<16x128xf32>, vector<128x32xf32>, vector<16x32xf32> -> vector<16x32xf32>
    %6 = arith.addf %0, %5 : vector<16x32xf32>
    %c0_6 = arith.constant 0 : index
    %c0_7 = arith.constant 0 : index
    %7 = vector.load %arg4[%c0_6, %c0_7] : memref<16x32xf32, #tpu.memory_space<vmem>>, vector<16x32xf32>
    tpu.vector_store %arg4[%c0_6, %c0_7], %6 {strides = array<i32>} : memref<16x32xf32, #tpu.memory_space<vmem>>, vector<16x32xf32>,
    return
  }
  func.func @transform_0(%arg0: i32) -> (i32, i32) {
    %c0_i32 = arith.constant 0 : i32
    %c0_i32_0 = arith.constant 0 : i32
    return %arg0, %c0_i32 : i32, i32
  }
  func.func @transform_1(%arg0: i32) -> (i32, i32) {
    %c0_i32 = arith.constant 0 : i32
    %c0_i32_0 = arith.constant 0 : i32
    %c0_i32_1 = arith.constant 0 : i32
    return %c0_i32, %c0_i32_0 : i32, i32
  }
  func.func @transform_2(%arg0: i32) -> (i32, i32) {
    %c0_i32 = arith.constant 0 : i32
    %c0_i32_0 = arith.constant 0 : i32
    %c0_i32_1 = arith.constant 0 : i32
    return %c0_i32, %c0_i32_0 : i32, i32
  }
  func.func @transform_3(%arg0: i32) -> (i32, i32) {
    %c0_i32 = arith.constant 0 : i32
    %c0_i32_0 = arith.constant 0 : i32
    return %arg0, %c0_i32 : i32, i32
  }
}

</mosaic_0001>

<llo_original>
// kernel: tpu_custom_call.1
$region0: #{tpu_custom_call.1}
  #allocation0 [shape = 'u32[]', space=smem, size = 0x4, offset = 0x4, fixed_abs, tag = 'smem constant byte address 0x4 - core index']
  #allocation1 [shape = 'u32[144,128]{1,0:T(1,128)}', space=vmem, size = 0x12000, scoped, tag = 'internal scratch']
  %s0 = inlined_call_operand.vmem [shape: f32[16,32], index: 0, kind: input, shape index: {}]
  %s1 = inlined_call_operand.vmem [shape: f32[32,128], index: 1, kind: input, shape index: {}]
  %s2 = inlined_call_operand.vmem [shape: f32[128,32], index: 2, kind: input, shape index: {}]
  %s3 = inlined_call_operand.hbm [shape: f32[16,32], index: 3, kind: output, shape index: {}]
  %s4 = sld [smem:[#allocation0]]
  $region22: #{tpu_custom_call.1} parent=0
    _
  %s6 = ssub.s32 1, %s4
  %s7 = scalar_select 0, %s6, %s4
  $region1: #{tpu_custom_call.1} parent=0
    #allocation2 [shape = 'u8[8192]{0}', space=vmem, size = 0x2000, scoped, tag = 'output window, operand 0, single buffered']
    #allocation3 [shape = 's32[1]{0}', space=sflag, size = 0x4, scoped, tag = 'scoped memory for tpu_custom_call.1']
    %8 = vsyncpa [#allocation3], 0
    // Predicated region
    $region2: #{tpu_custom_call.1} parent=1 // pred_check
      _
    $region3: #{tpu_custom_call.1} parent=1 // pred_check_branch
      %10 = sbr.rel (0) target = $region5
    $region4: #{tpu_custom_call.1} parent=1 // pred_region
      _
    $region5: #{tpu_custom_call.1} parent=1 // pred_fallthru
      _
    // Predicated region
    $region6: #{tpu_custom_call.1} parent=1 // pred_check
      _
    $region7: #{tpu_custom_call.1} parent=1 // pred_check_branch
      %12 = sbr.rel (0) target = $region9
    $region8: #{tpu_custom_call.1} parent=1 // pred_region
      _
    $region9: #{tpu_custom_call.1} parent=1 // pred_fallthru
      _
    // Predicated region
    $region10: #{tpu_custom_call.1} parent=1 // pred_check
      _
    $region11: #{tpu_custom_call.1} parent=1 // pred_check_branch
      %14 = sbr.rel (0) target = $region13
    $region12: #{tpu_custom_call.1} parent=1 // pred_region
      _
    $region13: #{tpu_custom_call.1} parent=1 // pred_fallthru
      _
    %v15 = vld [vmem:[%s0] sm:$0xff]
    %v16 = vld [vmem:[%s0 + $0x8] sm:$0xff]
    %v17 = vld [vmem:[%s1] sm:$0xff]
    %v18 = vld [vmem:[%s1 + $0x8] sm:$0xff]
    %v19 = vld [vmem:[%s1 + $0x10] sm:$0xff]
    %v20 = vld [vmem:[%s1 + $0x18] sm:$0xff]
    %vm21 = vcmask 261120
    %v23 = vsel %vm21, %v15, 0
    %v26 = vsel %vm21, %v16, 0
    %28 = vmatprep.subr.mxu0 0.0
    %29 = vmatpush1.msra.mxu0 %v17
    %30 = vmatprep.subr.mxu0 0.0
    %31 = vmatpush1.msra.mxu0 %v18
    %32 = vmatprep.subr.mxu0 0.0
    %33 = vmatpush1.msra.mxu0 %v19
    %34 = vmatprep.subr.mxu0 0.0
    %35 = vmatpush1.msra.mxu0 %v20
    %36 = vmatprep.subr.mxu0 0.0
    %37 = vmatpush1.msra.mxu0 0.0
    %38 = vmatprep.subr.mxu0 0.0
    %39 = vmatpush1.msra.mxu0 0.0
    %40 = vmatprep.subr.mxu0 0.0
    %41 = vmatpush1.msra.mxu0 0.0
    %42 = vmatprep.subr.mxu0 0.0
    %43 = vmatpush1.msra.mxu0 0.0
    %44 = vmatprep.subr.mxu0 0.0
    %45 = vmatpush1.msra.mxu0 0.0
    %46 = vmatprep.subr.mxu0 0.0
    %47 = vmatpush1.msra.mxu0 0.0
    %48 = vmatprep.subr.mxu0 0.0
    %49 = vmatpush1.msra.mxu0 0.0
    %50 = vmatprep.subr.mxu0 0.0
    %51 = vmatpush1.msra.mxu0 0.0
    %52 = vmatprep.subr.mxu0 0.0
    %53 = vmatpush1.msra.mxu0 0.0
    %54 = vmatprep.subr.mxu0 0.0
    %55 = vmatpush1.msra.mxu0 0.0
    %56 = vmatprep.subr.mxu0 0.0
    %57 = vmatpush1.msra.mxu0 0.0
    %58 = vmatprep.subr.mxu0 0.0
    %59 = vmatpush1.msra.mxu0 0.0
    %60 = vmatprep.subr.mxu0 0.0
    %61 = vmatpush1.msra.mxu0 0.0
    %62 = vmatprep.subr.mxu0 0.0
    %63 = vmatpush1.msra.mxu0 0.0
    %64 = vmatprep.subr.mxu0 0.0
    %65 = vmatpush1.msra.mxu0 0.0
    %66 = vmatprep.subr.mxu0 0.0
    %67 = vmatpush1.msra.mxu0 0.0
    %68 = vmatprep.subr.mxu0 0.0
    %69 = vmatpush1.msra.mxu0 0.0
    %70 = vmatprep.subr.mxu0 0.0
    %71 = vmatpush1.msra.mxu0 0.0
    %72 = vmatprep.subr.mxu0 0.0
    %73 = vmatpush1.msra.mxu0 0.0
    %74 = vmatprep.subr.mxu0 0.0
    %75 = vmatpush1.msra.mxu0 0.0
    %76 = vmatprep.subr.mxu0 0.0
    %77 = vmatpush1.msra.mxu0 0.0
    %78 = vmatprep.subr.mxu0 0.0
    %79 = vmatpush1.msra.mxu0 0.0
    %80 = vmatprep.subr.mxu0 0.0
    %81 = vmatpush1.msra.mxu0 0.0
    %82 = vmatprep.subr.mxu0 0.0
    %83 = vmatpush1.msra.mxu0 0.0
    %84 = vmatprep.subr.mxu0 0.0
    %85 = vmatpush1.msra.mxu0 0.0
    %86 = vmatprep.subr.mxu0 0.0
    %87 = vmatpush1.msra.mxu0 0.0
    %88 = vmatprep.subr.mxu0 0.0
    %89 = vmatpush1.msra.mxu0 0.0
    %90 = vmatprep.subr.mxu0 0.0
    %91 = vmatpush1.msra.mxu0 0.0
    %92 = vmatprep.mubr.f32.mxu0 0.0
    %93 = vmatmul.mubr.f32.gmra.mrb[0].mxu0 %v23
    %v94 = vpop.f32.mrb[0].mxu0
    %v95 = vadd.f32 0.0, %v94
    %v96 = vpop.f32.mrb[0].mxu0
    %97 = vmatprep.mubr.f32.mxu0 0.0
    %98 = vmatmul.mubr.f32.gmra.mrb[0].mxu0 %v26
    %v99 = vpop.f32.mrb[0].mxu0
    %v100 = vadd.f32 0.0, %v99
    %v101 = vpop.f32.mrb[0].mxu0
    %102 = vdwg.mxu0
    %v103 = vtanh.pop %v95
    %v104 = vtanh.pop %v100
    %v105 = vld [vmem:[%s2] sm:$0xff]
    %v106 = vld [vmem:[%s2 + $0x8] sm:$0xff]
    %v107 = vld [vmem:[%s2 + $0x10] sm:$0xff]
    %v108 = vld [vmem:[%s2 + $0x18] sm:$0xff]
    %v109 = vld [vmem:[%s2 + $0x20] sm:$0xff]
    %v110 = vld [vmem:[%s2 + $0x28] sm:$0xff]
    %v111 = vld [vmem:[%s2 + $0x30] sm:$0xff]
    %v112 = vld [vmem:[%s2 + $0x38] sm:$0xff]
    %v113 = vld [vmem:[%s2 + $0x40] sm:$0xff]
    %v114 = vld [vmem:[%s2 + $0x48] sm:$0xff]
    %v115 = vld [vmem:[%s2 + $0x50] sm:$0xff]
    %v116 = vld [vmem:[%s2 + $0x58] sm:$0xff]
    %v117 = vld [vmem:[%s2 + $0x60] sm:$0xff]
    %v118 = vld [vmem:[%s2 + $0x68] sm:$0xff]
    %v119 = vld [vmem:[%s2 + $0x70] sm:$0xff]
    %v120 = vld [vmem:[%s2 + $0x78] sm:$0xff]
    %121 = vmatprep.subr.mxu0 0.0
    %122 = vmatpush1.msra.mxu0 %v105
    %123 = vmatprep.subr.mxu0 0.0
    %124 = vmatpush1.msra.mxu0 %v106
    %125 = vmatprep.subr.mxu0 0.0
    %126 = vmatpush1.msra.mxu0 %v107
    %127 = vmatprep.subr.mxu0 0.0
    %128 = vmatpush1.msra.mxu0 %v108
    %129 = vmatprep.subr.mxu0 0.0
    %130 = vmatpush1.msra.mxu0 %v109
    %131 = vmatprep.subr.mxu0 0.0
    %132 = vmatpush1.msra.mxu0 %v110
    %133 = vmatprep.subr.mxu0 0.0
    %134 = vmatpush1.msra.mxu0 %v111
    %135 = vmatprep.subr.mxu0 0.0
    %136 = vmatpush1.msra.mxu0 %v112
    %137 = vmatprep.subr.mxu0 0.0
    %138 = vmatpush1.msra.mxu0 %v113
    %139 = vmatprep.subr.mxu0 0.0
    %140 = vmatpush1.msra.mxu0 %v114
    %141 = vmatprep.subr.mxu0 0.0
    %142 = vmatpush1.msra.mxu0 %v115
    %143 = vmatprep.subr.mxu0 0.0
    %144 = vmatpush1.msra.mxu0 %v116
    %145 = vmatprep.subr.mxu0 0.0
    %146 = vmatpush1.msra.mxu0 %v117
    %147 = vmatprep.subr.mxu0 0.0
    %148 = vmatpush1.msra.mxu0 %v118
    %149 = vmatprep.subr.mxu0 0.0
    %150 = vmatpush1.msra.mxu0 %v119
    %151 = vmatprep.subr.mxu0 0.0
    %152 = vmatpush1.msra.mxu0 %v120
    %153 = vmatprep.subr.mxu0 0.0
    %154 = vmatpush1.msra.mxu0 0.0
    %155 = vmatprep.subr.mxu0 0.0
    %156 = vmatpush1.msra.mxu0 0.0
    %157 = vmatprep.subr.mxu0 0.0
    %158 = vmatpush1.msra.mxu0 0.0
    %159 = vmatprep.subr.mxu0 0.0
    %160 = vmatpush1.msra.mxu0 0.0
    %161 = vmatprep.subr.mxu0 0.0
    %162 = vmatpush1.msra.mxu0 0.0
    %163 = vmatprep.subr.mxu0 0.0
    %164 = vmatpush1.msra.mxu0 0.0
    %165 = vmatprep.subr.mxu0 0.0
    %166 = vmatpush1.msra.mxu0 0.0
    %167 = vmatprep.subr.mxu0 0.0
    %168 = vmatpush1.msra.mxu0 0.0
    %169 = vmatprep.subr.mxu0 0.0
    %170 = vmatpush1.msra.mxu0 0.0
    %171 = vmatprep.subr.mxu0 0.0
    %172 = vmatpush1.msra.mxu0 0.0
    %173 = vmatprep.subr.mxu0 0.0
    %174 = vmatpush1.msra.mxu0 0.0
    %175 = vmatprep.subr.mxu0 0.0
    %176 = vmatpush1.msra.mxu0 0.0
    %177 = vmatprep.subr.mxu0 0.0
    %178 = vmatpush1.msra.mxu0 0.0
    %179 = vmatprep.subr.mxu0 0.0
    %180 = vmatpush1.msra.mxu0 0.0
    %181 = vmatprep.subr.mxu0 0.0
    %182 = vmatpush1.msra.mxu0 0.0
    %183 = vmatprep.subr.mxu0 0.0
    %184 = vmatpush1.msra.mxu0 0.0
    %185 = vmatprep.mubr.f32.mxu0 0.0
    %186 = vmatmul.mubr.f32.gmra.mrb[0].mxu0 %v103
    %v187 = vpop.f32.mrb[0].mxu0
    %v188 = vadd.f32 0.0, %v187
    %v189 = vpop.f32.mrb[0].mxu0
    %190 = vmatprep.mubr.f32.mxu0 0.0
    %191 = vmatmul.mubr.f32.gmra.mrb[0].mxu0 %v104
    %v192 = vpop.f32.mrb[0].mxu0
    %v193 = vadd.f32 0.0, %v192
    %v194 = vpop.f32.mrb[0].mxu0
    %195 = vdwg.mxu0
    %v196 = vadd.f32 %v15, %v188
    %v197 = vadd.f32 %v16, %v193
    %198 = vst.msk [vmem:[#allocation2] sm:$0xff] %vm21, %v196
    %199 = vst.msk [vmem:[#allocation2 + $0x8] sm:$0xff] %vm21, %v197
    // Predicated region
    $region14: #{tpu_custom_call.1} parent=1 // pred_check
      _
    $region15: #{tpu_custom_call.1} parent=1 // pred_check_branch
      %201 = sbr.rel (0) target = $region17
    $region16: #{tpu_custom_call.1} parent=1 // pred_region
      %s203 = ssub.s32 256, 256
      %204 = vsyncadd [#allocation3], %s203
      %s205 = sshll.u32 [#allocation2], 4
      %s206 = int_to_ptr.vmem [resolvable:$true] %s205
      %211 = dma.vmem_to_hbm [thread:$0]  %s206, 256, %s3, [#allocation3], 128, 128, 8
    $region17: #{tpu_custom_call.1} parent=1 // pred_fallthru
      _
    // Predicated region
    $region18: #{tpu_custom_call.1} parent=1 // pred_check
      _
    $region19: #{tpu_custom_call.1} parent=1 // pred_check_branch
      %213 = sbr.rel (0) target = $region21
    $region20: #{tpu_custom_call.1} parent=1 // pred_region
      %214 = dma.done [#allocation3], 256
    $region21: #{tpu_custom_call.1} parent=1 // pred_fallthru
      _
    %215 = vsyncpa [#allocation3], 1

// kernel: tpu_custom_call.1
$region0: #{tpu_custom_call.1}
  #allocation0 [shape = 'u32[]', space=smem, size = 0x4, offset = 0x4, fixed_abs, tag = 'smem constant byte address 0x4 - core index']
  #allocation1 [shape = 'u32[144,128]{1,0:T(1,128)}', space=vmem, size = 0x12000, scoped, tag = 'internal scratch']
  %s0 = inlined_call_operand.vmem [shape: f32[16,32], index: 0, kind: input, shape index: {}]
  %s1 = inlined_call_operand.vmem [shape: f32[32,128], index: 1, kind: input, shape index: {}]
  %s2 = inlined_call_operand.vmem [shape: f32[128,32], index: 2, kind: input, shape index: {}]
  %s3 = inlined_call_operand.hbm [shape: f32[16,32], index: 3, kind: output, shape index: {}]
  %s4 = sld [smem:[#allocation0]]
  $region22: #{tpu_custom_call.1} parent=0
    _
  %s6 = ssub.s32 1, %s4
  %s7 = scalar_select 0, %s6, %s4
  $region1: #{tpu_custom_call.1} parent=0
    #allocation2 [shape = 'u8[8192]{0}', space=vmem, size = 0x2000, scoped, tag = 'output window, operand 0, single buffered']
    #allocation3 [shape = 's32[1]{0}', space=sflag, size = 0x4, scoped, tag = 'scoped memory for tpu_custom_call.1']
    %8 = vsyncpa [#allocation3], 0
    // Predicated region
    $region2: #{tpu_custom_call.1} parent=1 // pred_check
      _
    $region3: #{tpu_custom_call.1} parent=1 // pred_check_branch
      %10 = sbr.rel (0) target = $region5
    $region4: #{tpu_custom_call.1} parent=1 // pred_region
      _
    $region5: #{tpu_custom_call.1} parent=1 // pred_fallthru
      _
    // Predicated region
    $region6: #{tpu_custom_call.1} parent=1 // pred_check
      _
    $region7: #{tpu_custom_call.1} parent=1 // pred_check_branch
      %12 = sbr.rel (0) target = $region9
    $region8: #{tpu_custom_call.1} parent=1 // pred_region
      _
    $region9: #{tpu_custom_call.1} parent=1 // pred_fallthru
      _
    // Predicated region
    $region10: #{tpu_custom_call.1} parent=1 // pred_check
      _
    $region11: #{tpu_custom_call.1} parent=1 // pred_check_branch
      %14 = sbr.rel (0) target = $region13
    $region12: #{tpu_custom_call.1} parent=1 // pred_region
      _
    $region13: #{tpu_custom_call.1} parent=1 // pred_fallthru
      _
    %v15 = vld [vmem:[%s0] sm:$0xff]
    %v16 = vld [vmem:[%s0 + $0x8] sm:$0xff]
    %v17 = vld [vmem:[%s1] sm:$0xff]
    %v18 = vld [vmem:[%s1 + $0x8] sm:$0xff]
    %v19 = vld [vmem:[%s1 + $0x10] sm:$0xff]
    %v20 = vld [vmem:[%s1 + $0x18] sm:$0xff]
    %vm21 = vcmask 261120
    %v23 = vsel %vm21, %v15, 0
    %v26 = vsel %vm21, %v16, 0
    %28 = vmatprep.subr.mxu0 0.0
    %29 = vmatpush1.msra.mxu0 %v17
    %30 = vmatprep.subr.mxu0 0.0
    %31 = vmatpush1.msra.mxu0 %v18
    %32 = vmatprep.subr.mxu0 0.0
    %33 = vmatpush1.msra.mxu0 %v19
    %34 = vmatprep.subr.mxu0 0.0
    %35 = vmatpush1.msra.mxu0 %v20
    %36 = vmatprep.subr.mxu0 0.0
    %37 = vmatpush1.msra.mxu0 0.0
    %38 = vmatprep.subr.mxu0 0.0
    %39 = vmatpush1.msra.mxu0 0.0
    %40 = vmatprep.subr.mxu0 0.0
    %41 = vmatpush1.msra.mxu0 0.0
    %42 = vmatprep.subr.mxu0 0.0
    %43 = vmatpush1.msra.mxu0 0.0
    %44 = vmatprep.subr.mxu0 0.0
    %45 = vmatpush1.msra.mxu0 0.0
    %46 = vmatprep.subr.mxu0 0.0
    %47 = vmatpush1.msra.mxu0 0.0
    %48 = vmatprep.subr.mxu0 0.0
    %49 = vmatpush1.msra.mxu0 0.0
    %50 = vmatprep.subr.mxu0 0.0
    %51 = vmatpush1.msra.mxu0 0.0
    %52 = vmatprep.subr.mxu0 0.0
    %53 = vmatpush1.msra.mxu0 0.0
    %54 = vmatprep.subr.mxu0 0.0
    %55 = vmatpush1.msra.mxu0 0.0
    %56 = vmatprep.subr.mxu0 0.0
    %57 = vmatpush1.msra.mxu0 0.0
    %58 = vmatprep.subr.mxu0 0.0
    %59 = vmatpush1.msra.mxu0 0.0
    %60 = vmatprep.subr.mxu0 0.0
    %61 = vmatpush1.msra.mxu0 0.0
    %62 = vmatprep.subr.mxu0 0.0
    %63 = vmatpush1.msra.mxu0 0.0
    %64 = vmatprep.subr.mxu0 0.0
    %65 = vmatpush1.msra.mxu0 0.0
    %66 = vmatprep.subr.mxu0 0.0
    %67 = vmatpush1.msra.mxu0 0.0
    %68 = vmatprep.subr.mxu0 0.0
    %69 = vmatpush1.msra.mxu0 0.0
    %70 = vmatprep.subr.mxu0 0.0
    %71 = vmatpush1.msra.mxu0 0.0
    %72 = vmatprep.subr.mxu0 0.0
    %73 = vmatpush1.msra.mxu0 0.0
    %74 = vmatprep.subr.mxu0 0.0
    %75 = vmatpush1.msra.mxu0 0.0
    %76 = vmatprep.subr.mxu0 0.0
    %77 = vmatpush1.msra.mxu0 0.0
    %78 = vmatprep.subr.mxu0 0.0
    %79 = vmatpush1.msra.mxu0 0.0
    %80 = vmatprep.subr.mxu0 0.0
    %81 = vmatpush1.msra.mxu0 0.0
    %82 = vmatprep.subr.mxu0 0.0
    %83 = vmatpush1.msra.mxu0 0.0
    %84 = vmatprep.subr.mxu0 0.0
    %85 = vmatpush1.msra.mxu0 0.0
    %86 = vmatprep.subr.mxu0 0.0
    %87 = vmatpush1.msra.mxu0 0.0
    %88 = vmatprep.subr.mxu0 0.0
    %89 = vmatpush1.msra.mxu0 0.0
    %90 = vmatprep.subr.mxu0 0.0
    %91 = vmatpush1.msra.mxu0 0.0
    %92 = vmatprep.mubr.f32.mxu0 0.0
    %93 = vmatmul.mubr.f32.gmra.mrb[0].mxu0 %v23
    %v94 = vpop.f32.mrb[0].mxu0
    %v95 = vadd.f32 0.0, %v94
    %v96 = vpop.f32.mrb[0].mxu0
    %97 = vmatprep.mubr.f32.mxu0 0.0
    %98 = vmatmul.mubr.f32.gmra.mrb[0].mxu0 %v26
    %v99 = vpop.f32.mrb[0].mxu0
    %v100 = vadd.f32 0.0, %v99
    %v101 = vpop.f32.mrb[0].mxu0
    %102 = vdwg.mxu0
    %v103 = vtanh.pop %v95
    %v104 = vtanh.pop %v100
    %v105 = vld [vmem:[%s2] sm:$0xff]
    %v106 = vld [vmem:[%s2 + $0x8] sm:$0xff]
    %v107 = vld [vmem:[%s2 + $0x10] sm:$0xff]
    %v108 = vld [vmem:[%s2 + $0x18] sm:$0xff]
    %v109 = vld [vmem:[%s2 + $0x20] sm:$0xff]
    %v110 = vld [vmem:[%s2 + $0x28] sm:$0xff]
    %v111 = vld [vmem:[%s2 + $0x30] sm:$0xff]
    %v112 = vld [vmem:[%s2 + $0x38] sm:$0xff]
    %v113 = vld [vmem:[%s2 + $0x40] sm:$0xff]
    %v114 = vld [vmem:[%s2 + $0x48] sm:$0xff]
    %v115 = vld [vmem:[%s2 + $0x50] sm:$0xff]
    %v116 = vld [vmem:[%s2 + $0x58] sm:$0xff]
    %v117 = vld [vmem:[%s2 + $0x60] sm:$0xff]
    %v118 = vld [vmem:[%s2 + $0x68] sm:$0xff]
    %v119 = vld [vmem:[%s2 + $0x70] sm:$0xff]
    %v120 = vld [vmem:[%s2 + $0x78] sm:$0xff]
    %121 = vmatprep.subr.mxu0 0.0
    %122 = vmatpush1.msra.mxu0 %v105
    %123 = vmatprep.subr.mxu0 0.0
    %124 = vmatpush1.msra.mxu0 %v106
    %125 = vmatprep.subr.mxu0 0.0
    %126 = vmatpush1.msra.mxu0 %v107
    %127 = vmatprep.subr.mxu0 0.0
    %128 = vmatpush1.msra.mxu0 %v108
    %129 = vmatprep.subr.mxu0 0.0
    %130 = vmatpush1.msra.mxu0 %v109
    %131 = vmatprep.subr.mxu0 0.0
    %132 = vmatpush1.msra.mxu0 %v110
    %133 = vmatprep.subr.mxu0 0.0
    %134 = vmatpush1.msra.mxu0 %v111
    %135 = vmatprep.subr.mxu0 0.0
    %136 = vmatpush1.msra.mxu0 %v112
    %137 = vmatprep.subr.mxu0 0.0
    %138 = vmatpush1.msra.mxu0 %v113
    %139 = vmatprep.subr.mxu0 0.0
    %140 = vmatpush1.msra.mxu0 %v114
    %141 = vmatprep.subr.mxu0 0.0
    %142 = vmatpush1.msra.mxu0 %v115
    %143 = vmatprep.subr.mxu0 0.0
    %144 = vmatpush1.msra.mxu0 %v116
    %145 = vmatprep.subr.mxu0 0.0
    %146 = vmatpush1.msra.mxu0 %v117
    %147 = vmatprep.subr.mxu0 0.0
    %148 = vmatpush1.msra.mxu0 %v118
    %149 = vmatprep.subr.mxu0 0.0
    %150 = vmatpush1.msra.mxu0 %v119
    %151 = vmatprep.subr.mxu0 0.0
    %152 = vmatpush1.msra.mxu0 %v120
    %153 = vmatprep.subr.mxu0 0.0
    %154 = vmatpush1.msra.mxu0 0.0
    %155 = vmatprep.subr.mxu0 0.0
    %156 = vmatpush1.msra.mxu0 0.0
    %157 = vmatprep.subr.mxu0 0.0
    %158 = vmatpush1.msra.mxu0 0.0
    %159 = vmatprep.subr.mxu0 0.0
    %160 = vmatpush1.msra.mxu0 0.0
    %161 = vmatprep.subr.mxu0 0.0
    %162 = vmatpush1.msra.mxu0 0.0
    %163 = vmatprep.subr.mxu0 0.0
    %164 = vmatpush1.msra.mxu0 0.0
    %165 = vmatprep.subr.mxu0 0.0
    %166 = vmatpush1.msra.mxu0 0.0
    %167 = vmatprep.subr.mxu0 0.0
    %168 = vmatpush1.msra.mxu0 0.0
    %169 = vmatprep.subr.mxu0 0.0
    %170 = vmatpush1.msra.mxu0 0.0
    %171 = vmatprep.subr.mxu0 0.0
    %172 = vmatpush1.msra.mxu0 0.0
    %173 = vmatprep.subr.mxu0 0.0
    %174 = vmatpush1.msra.mxu0 0.0
    %175 = vmatprep.subr.mxu0 0.0
    %176 = vmatpush1.msra.mxu0 0.0
    %177 = vmatprep.subr.mxu0 0.0
    %178 = vmatpush1.msra.mxu0 0.0
    %179 = vmatprep.subr.mxu0 0.0
    %180 = vmatpush1.msra.mxu0 0.0
    %181 = vmatprep.subr.mxu0 0.0
    %182 = vmatpush1.msra.mxu0 0.0
    %183 = vmatprep.subr.mxu0 0.0
    %184 = vmatpush1.msra.mxu0 0.0
    %185 = vmatprep.mubr.f32.mxu0 0.0
    %186 = vmatmul.mubr.f32.gmra.mrb[0].mxu0 %v103
    %v187 = vpop.f32.mrb[0].mxu0
    %v188 = vadd.f32 0.0, %v187
    %v189 = vpop.f32.mrb[0].mxu0
    %190 = vmatprep.mubr.f32.mxu0 0.0
    %191 = vmatmul.mubr.f32.gmra.mrb[0].mxu0 %v104
    %v192 = vpop.f32.mrb[0].mxu0
    %v193 = vadd.f32 0.0, %v192
    %v194 = vpop.f32.mrb[0].mxu0
    %195 = vdwg.mxu0
    %v196 = vadd.f32 %v15, %v188
    %v197 = vadd.f32 %v16, %v193
    %198 = vst.msk [vmem:[#allocation2] sm:$0xff] %vm21, %v196
    %199 = vst.msk [vmem:[#allocation2 + $0x8] sm:$0xff] %vm21, %v197
    // Predicated region
    $region14: #{tpu_custom_call.1} parent=1 // pred_check
      _
    $region15: #{tpu_custom_call.1} parent=1 // pred_check_branch
      %201 = sbr.rel (0) target = $region17
    $region16: #{tpu_custom_call.1} parent=1 // pred_region
      %s203 = ssub.s32 256, 256
      %204 = vsyncadd [#allocation3], %s203
      %s205 = sshll.u32 [#allocation2], 4
      %s206 = int_to_ptr.vmem [resolvable:$true] %s205
      %211 = dma.vmem_to_hbm [thread:$0]  %s206, 256, %s3, [#allocation3], 128, 128, 8
    $region17: #{tpu_custom_call.1} parent=1 // pred_fallthru
      _
    // Predicated region
    $region18: #{tpu_custom_call.1} parent=1 // pred_check
      _
    $region19: #{tpu_custom_call.1} parent=1 // pred_check_branch
      %213 = sbr.rel (0) target = $region21
    $region20: #{tpu_custom_call.1} parent=1 // pred_region
      %214 = dma.done [#allocation3], 256
    $region21: #{tpu_custom_call.1} parent=1 // pred_fallthru
      _
    %215 = vsyncpa [#allocation3], 1

</llo_original>
